<compile_context>
chip_gen: v7x
topology: tpu7x:2x2x1
jax: 0.10.0
libtpu: 0.0.40
codegen_flags: <defaults>
</compile_context>

<pallas_src>
import functools

import jax
import jax.numpy as jnp
from jax import lax
from jax.experimental import pallas as pl
from jax.experimental.pallas import tpu as pltpu

_LANE = 128          # lanes per vreg
_DENSE = 8 * _LANE   # one fully dense (8, 128) vreg worth of batch elements


def _timernn_kernel(num_layers, n_chunks, chunk,
                    x_ref, w0_ref, scal_ref, out_ref, pre_ref):
    """One batch tile of the TimeRNN forward.

    x_ref   : (tile_b, F)         VMEM  natural-layout input tile
    w0_ref  : (3, F)              VMEM  layer-0 W_ih rows [i, g, o] (grid resident)
    scal_ref: (NS,)               SMEM  [b_i0, b_g0, b_o0,
                                         (w_i, w_g, w_o, b_i, b_g, b_o) per layer >= 1,
                                         w_fc, b_fc]
    out_ref : (n_chunks, chunk)   VMEM  leaky_relu(fc1(h_top)), batch-major rows
    pre_ref : (3*n_chunks, chunk) VMEM  dense gate pre-activation scratch
    """
    w0 = w0_ref[...]                                                  # (3, F)

    # Layer-0 gate pre-activations: chunked MXU dots (trans_b is MXU-native).
    # Each chunk's gate rows land at scratch rows (c, n+c, 2n+c) so the
    # transcendental stage below operates on (8, 128)-dense planes.
    for c in range(n_chunks):
        xc = x_ref[pl.ds(c * chunk, chunk), :]                        # (chunk, F)
        pc = lax.dot_general(w0, xc, (((1,), (1,)), ((), ())),
                             preferred_element_type=jnp.float32)      # (3, chunk)
        pre_ref[pl.ds(c, 1), :] = pc[0:1, :]
        pre_ref[pl.ds(n_chunks + c, 1), :] = pc[1:2, :]
        pre_ref[pl.ds(2 * n_chunks + c, 1), :] = pc[2:3, :]

    def sig(z):
        # sigmoid via a single tanh EUP pass (exp + divide would be two).
        return 0.5 * jnp.tanh(0.5 * z) + 0.5

    i = sig(pre_ref[pl.ds(0, n_chunks), :] + scal_ref[0])             # (n, chunk)
    g = jnp.tanh(pre_ref[pl.ds(n_chunks, n_chunks), :] + scal_ref[1])
    o = sig(pre_ref[pl.ds(2 * n_chunks, n_chunks), :] + scal_ref[2])
    h = o * jnp.tanh(i * g)                                           # c0 == 0 -> c = i*g

    # Layers 1..L-1: input width == h_size == 1 -> scalar multiply-adds (VPU).
    off = 3
    for _ in range(1, num_layers):
        w_i, w_g, w_o = scal_ref[off + 0], scal_ref[off + 1], scal_ref[off + 2]
        b_i, b_g, b_o = scal_ref[off + 3], scal_ref[off + 4], scal_ref[off + 5]
        off += 6
        i = sig(w_i * h + b_i)
        g = jnp.tanh(w_g * h + b_g)
        o = sig(w_o * h + b_o)
        h = o * jnp.tanh(i * g)

    # fc1 (Linear(1, 1)) + leaky_relu(negative_slope=0.01)
    y = scal_ref[off] * h + scal_ref[off + 1]
    out_ref[...] = jnp.where(y >= 0.0, y, 0.01 * y)


def timernn_forward(x, params, *, h_size, num_layers, tile_b=8192,
                    input_dtype=jnp.float32):
    """x: (batch, in_features) -> (batch, 1) float32."""
    if h_size != 1:
        # fc1 = nn.Linear(1, 1) in the reference module only type-checks for h_size == 1.
        raise ValueError("TimeRNN forward requires h_size == 1 (fc1 is Linear(1, 1)).")
    batch, in_features = x.shape

    # --- tile sizing --------------------------------------------------------
    b128 = pl.cdiv(batch, _LANE) * _LANE
    tile = max(_LANE, min(int(tile_b), b128))
    # v7x has 2 TensorCores per chip: give the parallel grid >= 2 steps when
    # the batch is large enough (no measurable cost on v5e/v6e).
    if b128 >= 2 * _DENSE and tile > b128 // 2:
        tile = max(_DENSE, (b128 // 2) // _DENSE * _DENSE)
    if tile >= _DENSE:
        tile = tile // _DENSE * _DENSE     # multiple of 1024 -> 8 dense chunks
        n_chunks = 8
    else:
        tile = tile // _LANE * _LANE       # tiny batches: one 128-lane chunk each
        n_chunks = tile // _LANE
    chunk = tile // n_chunks
    grid_b = pl.cdiv(batch, tile)

    # --- parameter packing --------------------------------------------------
    # Layer 0: keep only the live gate rows (i, g, o) of W_ih; w_hh and the
    # forget gate only ever touch the zero initial state.
    w_ih0, _, b_ih0, b_hh0 = params["lstm"][0]
    w0 = jnp.stack([w_ih0[0], w_ih0[2], w_ih0[3]]).astype(input_dtype)    # (3, F)
    b0 = (b_ih0 + b_hh0).astype(jnp.float32)
    scal = [b0[0], b0[2], b0[3]]
    for layer in range(1, num_layers):
        w_ih, _, b_ih, b_hh = params["lstm"][layer]
        w_ih = w_ih.astype(jnp.float32)
        bb = (b_ih + b_hh).astype(jnp.float32)
        scal += [w_ih[0, 0], w_ih[2, 0], w_ih[3, 0], bb[0], bb[2], bb[3]]
    w_fc, b_fc = params["fc"]
    scal += [w_fc.astype(jnp.float32)[0, 0], b_fc.astype(jnp.float32)[0]]
    scal_tbl = jnp.stack(scal)                                            # (NS,) f32

    x_in = x.astype(input_dtype)            # no-op for the default f32 path

    # Scoped VMEM: only raise the limit when very large tiles actually need it
    # (the (tile, F) tile lane-pads F -> 128 in VMEM and is double-buffered).
    lane_pad = max(_LANE, pl.cdiv(in_features, _LANE) * _LANE)
    vmem_need = (2 * tile * lane_pad * jnp.dtype(input_dtype).itemsize
                 + 2 * n_chunks * chunk * 4          # output double buffer
                 + 3 * n_chunks * chunk * 4           # pre-activation scratch
                 + (1 << 20))
    compiler_kwargs = dict(dimension_semantics=("parallel",))
    if vmem_need > 30 * 1024 * 1024:
        compiler_kwargs["vmem_limit_bytes"] = int(vmem_need + (8 << 20))

    out2d = pl.pallas_call(
        functools.partial(_timernn_kernel, num_layers, n_chunks, chunk),
        out_shape=jax.ShapeDtypeStruct((grid_b * n_chunks, chunk), jnp.float32),
        grid=(grid_b,),
        in_specs=[
            pl.BlockSpec((tile, in_features), lambda b: (b, 0)),       # natural-layout x
            pl.BlockSpec((3, in_features), lambda b: (0, 0)),          # resident weight
            pl.BlockSpec(memory_space=pltpu.MemorySpace.SMEM),         # packed scalars
        ],
        out_specs=pl.BlockSpec((n_chunks, chunk), lambda b: (b, 0)),   # lane-dense output
        scratch_shapes=[pltpu.VMEM((3 * n_chunks, chunk), jnp.float32)],
        compiler_params=pltpu.CompilerParams(**compiler_kwargs),
    )(x_in, w0, scal_tbl)

    # Row-major flatten of (grid*n_chunks, chunk) is exactly batch order.
    return out2d.reshape(-1)[:batch, None]                             # (batch, 1)


def init_params(key, in_features, h_size, num_layers):
    """Deterministic synthetic parameters (torch-style uniform init bounds)."""
    params = {"lstm": [], "fc": None}
    bound = 1.0 / (h_size ** 0.5)
    for layer in range(num_layers):
        in_dim = in_features if layer == 0 else h_size
        key, k1, k2, k3, k4 = jax.random.split(key, 5)
        w_ih = jax.random.uniform(k1, (4 * h_size, in_dim), jnp.float32, -bound, bound)
        w_hh = jax.random.uniform(k2, (4 * h_size, h_size), jnp.float32, -bound, bound)
        b_ih = jax.random.uniform(k3, (4 * h_size,), jnp.float32, -bound, bound)
        b_hh = jax.random.uniform(k4, (4 * h_size,), jnp.float32, -bound, bound)
        params["lstm"].append((w_ih, w_hh, b_ih, b_hh))
    key, k5, k6 = jax.random.split(key, 3)
    w_fc = jax.random.uniform(k5, (1, 1), jnp.float32, -1.0, 1.0)
    b_fc = jax.random.uniform(k6, (1,), jnp.float32, -1.0, 1.0)
    params["fc"] = (w_fc, b_fc)
    return params


def timernn_reference(x, params, *, h_size, num_layers):
    """Pure-JAX reference mirroring torch.nn.LSTM(seq=1) + Linear + leaky_relu."""
    batch = x.shape[0]
    inp = x
    for layer in range(num_layers):
        w_ih, w_hh, b_ih, b_hh = params["lstm"][layer]
        h0 = jnp.zeros((batch, h_size), jnp.float32)
        c0 = jnp.zeros((batch, h_size), jnp.float32)
        gates = inp @ w_ih.T + h0 @ w_hh.T + b_ih + b_hh
        i = jax.nn.sigmoid(gates[:, :h_size])
        f = jax.nn.sigmoid(gates[:, h_size:2 * h_size])
        g = jnp.tanh(gates[:, 2 * h_size:3 * h_size])
        o = jax.nn.sigmoid(gates[:, 3 * h_size:4 * h_size])
        c = f * c0 + i * g
        inp = o * jnp.tanh(c)
    w_fc, b_fc = params["fc"]
    y = inp @ w_fc.T + b_fc
    return jnp.where(y >= 0.0, y, 0.01 * y)


if __name__ == "__main__":
    # Small shapes consistent with the module: batch=8, in_features=16,
    # h_size=1 (required by fc1 = nn.Linear(1, 1)), layer_amnt=2.
    bat_size, in_features, h_size, layer_amnt = 8, 16, 1, 2

    key = jax.random.PRNGKey(0)
    key, xk = jax.random.split(key)
    x = jax.random.normal(xk, (bat_size, in_features), jnp.float32)
    params = init_params(key, in_features, h_size, layer_amnt)

    out = timernn_forward(x, params, h_size=h_size, num_layers=layer_amnt)
    out = jax.block_until_ready(out)

    ref = timernn_reference(x, params, h_size=h_size, num_layers=layer_amnt)
    assert out.shape == (bat_size, 1)
    assert bool(jnp.allclose(out, ref, atol=1e-5, rtol=1e-5))
    print("KERNEL_OK")
</pallas_src>

<mosaic_0001>
module attributes {stable_mosaic.version = 11 : i64} {
  func.func @_timernn_kernel(%arg0: i32, %arg1: memref<128x16xf32, #tpu.memory_space<vmem>>, %arg2: memref<3x16xf32, #tpu.memory_space<vmem>>, %arg3: memref<11xf32, #tpu.memory_space<smem>>, %arg4: memref<1x128xf32, #tpu.memory_space<vmem>>, %arg5: memref<3x128xf32, #tpu.memory_space<vmem>>) attributes {dimension_semantics = [#tpu.dimension_semantics<parallel>], iteration_bounds = array<i64: 1>, scalar_prefetch = 0 : i64, scratch_operands = 1 : i64, tpu.core_type = #tpu.core_type<tc>, window_params = [{transform_indices = @transform_0, window_bounds = array<i64: 128, 16>}, {pipeline_mode = #tpu.pipeline_mode<synchronous>, transform_indices = @transform_1, window_bounds = array<i64: 3, 16>}, {transform_indices = @transform_2, window_bounds = array<i64: 11>}, {transform_indices = @transform_3, window_bounds = array<i64: 1, 128>}]} {
    %c0 = arith.constant 0 : index
    %c0_0 = arith.constant 0 : index
    %0 = vector.load %arg2[%c0, %c0_0] : memref<3x16xf32, #tpu.memory_space<vmem>>, vector<3x16xf32>
    %c0_1 = arith.constant 0 : index
    %c0_2 = arith.constant 0 : index
    %1 = vector.load %arg1[%c0_1, %c0_2] : memref<128x16xf32, #tpu.memory_space<vmem>>, vector<128x16xf32>
    %cst = arith.constant dense<0.000000e+00> : vector<3x128xf32>
    %2 = tpu.matmul %0, %1, %cst {dimension_numbers = #tpu.dot_dimension_numbers<[1], [1], [0], [0], [0, 0, 1, 0], [], []>} : vector<3x16xf32>, vector<128x16xf32>, vector<3x128xf32> -> vector<3x128xf32>
    %3 = vector.extract_strided_slice %2 {offsets = [0, 0], sizes = [1, 128], strides = [1, 1]} : vector<3x128xf32> to vector<1x128xf32>
    %c0_3 = arith.constant 0 : index
    %c0_4 = arith.constant 0 : index
    %4 = vector.load %arg5[%c0_3, %c0_4] : memref<3x128xf32, #tpu.memory_space<vmem>>, vector<1x128xf32>
    tpu.vector_store %arg5[%c0_3, %c0_4], %3 {strides = array<i32>} : memref<3x128xf32, #tpu.memory_space<vmem>>, vector<1x128xf32>,
    %5 = vector.extract_strided_slice %2 {offsets = [1, 0], sizes = [1, 128], strides = [1, 1]} : vector<3x128xf32> to vector<1x128xf32>
    %c1 = arith.constant 1 : index
    %c0_5 = arith.constant 0 : index
    %6 = vector.load %arg5[%c1, %c0_5] : memref<3x128xf32, #tpu.memory_space<vmem>>, vector<1x128xf32>
    tpu.vector_store %arg5[%c1, %c0_5], %5 {strides = array<i32>} : memref<3x128xf32, #tpu.memory_space<vmem>>, vector<1x128xf32>,
    %7 = vector.extract_strided_slice %2 {offsets = [2, 0], sizes = [1, 128], strides = [1, 1]} : vector<3x128xf32> to vector<1x128xf32>
    %c2 = arith.constant 2 : index
    %c0_6 = arith.constant 0 : index
    %8 = vector.load %arg5[%c2, %c0_6] : memref<3x128xf32, #tpu.memory_space<vmem>>, vector<1x128xf32>
    tpu.vector_store %arg5[%c2, %c0_6], %7 {strides = array<i32>} : memref<3x128xf32, #tpu.memory_space<vmem>>, vector<1x128xf32>,
    %c0_7 = arith.constant 0 : index
    %c0_8 = arith.constant 0 : index
    %9 = vector.load %arg5[%c0_7, %c0_8] : memref<3x128xf32, #tpu.memory_space<vmem>>, vector<1x128xf32>
    %c0_9 = arith.constant 0 : index
    %10 = memref.load %arg3[%c0_9] : memref<11xf32, #tpu.memory_space<smem>>
    %11 = vector.broadcast %10 : f32 to vector<1x128xf32>
    %12 = arith.addf %9, %11 : vector<1x128xf32>
    %cst_10 = arith.constant 5.000000e-01 : f32
    %13 = vector.broadcast %cst_10 : f32 to vector<1x128xf32>
    %14 = arith.mulf %13, %12 : vector<1x128xf32>
    %15 = math.tanh %14 : vector<1x128xf32>
    %cst_11 = arith.constant 5.000000e-01 : f32
    %16 = vector.broadcast %cst_11 : f32 to vector<1x128xf32>
    %17 = arith.mulf %16, %15 : vector<1x128xf32>
    %cst_12 = arith.constant 5.000000e-01 : f32
    %18 = vector.broadcast %cst_12 : f32 to vector<1x128xf32>
    %19 = arith.addf %17, %18 : vector<1x128xf32>
    %c1_13 = arith.constant 1 : index
    %c0_14 = arith.constant 0 : index
    %20 = vector.load %arg5[%c1_13, %c0_14] : memref<3x128xf32, #tpu.memory_space<vmem>>, vector<1x128xf32>
    %c1_15 = arith.constant 1 : index
    %21 = memref.load %arg3[%c1_15] : memref<11xf32, #tpu.memory_space<smem>>
    %22 = vector.broadcast %21 : f32 to vector<1x128xf32>
    %23 = arith.addf %20, %22 : vector<1x128xf32>
    %24 = math.tanh %23 : vector<1x128xf32>
    %c2_16 = arith.constant 2 : index
    %c0_17 = arith.constant 0 : index
    %25 = vector.load %arg5[%c2_16, %c0_17] : memref<3x128xf32, #tpu.memory_space<vmem>>, vector<1x128xf32>
    %c2_18 = arith.constant 2 : index
    %26 = memref.load %arg3[%c2_18] : memref<11xf32, #tpu.memory_space<smem>>
    %27 = vector.broadcast %26 : f32 to vector<1x128xf32>
    %28 = arith.addf %25, %27 : vector<1x128xf32>
    %cst_19 = arith.constant 5.000000e-01 : f32
    %29 = vector.broadcast %cst_19 : f32 to vector<1x128xf32>
    %30 = arith.mulf %29, %28 : vector<1x128xf32>
    %31 = math.tanh %30 : vector<1x128xf32>
    %cst_20 = arith.constant 5.000000e-01 : f32
    %32 = vector.broadcast %cst_20 : f32 to vector<1x128xf32>
    %33 = arith.mulf %32, %31 : vector<1x128xf32>
    %cst_21 = arith.constant 5.000000e-01 : f32
    %34 = vector.broadcast %cst_21 : f32 to vector<1x128xf32>
    %35 = arith.addf %33, %34 : vector<1x128xf32>
    %36 = arith.mulf %19, %24 : vector<1x128xf32>
    %37 = math.tanh %36 : vector<1x128xf32>
    %38 = arith.mulf %35, %37 : vector<1x128xf32>
    %c3 = arith.constant 3 : index
    %39 = memref.load %arg3[%c3] : memref<11xf32, #tpu.memory_space<smem>>
    %c4 = arith.constant 4 : index
    %40 = memref.load %arg3[%c4] : memref<11xf32, #tpu.memory_space<smem>>
    %c5 = arith.constant 5 : index
    %41 = memref.load %arg3[%c5] : memref<11xf32, #tpu.memory_space<smem>>
    %c6 = arith.constant 6 : index
    %42 = memref.load %arg3[%c6] : memref<11xf32, #tpu.memory_space<smem>>
    %c7 = arith.constant 7 : index
    %43 = memref.load %arg3[%c7] : memref<11xf32, #tpu.memory_space<smem>>
    %c8 = arith.constant 8 : index
    %44 = memref.load %arg3[%c8] : memref<11xf32, #tpu.memory_space<smem>>
    %45 = vector.broadcast %39 : f32 to vector<1x128xf32>
    %46 = arith.mulf %45, %38 : vector<1x128xf32>
    %47 = vector.broadcast %42 : f32 to vector<1x128xf32>
    %48 = arith.addf %46, %47 : vector<1x128xf32>
    %cst_22 = arith.constant 5.000000e-01 : f32
    %49 = vector.broadcast %cst_22 : f32 to vector<1x128xf32>
    %50 = arith.mulf %49, %48 : vector<1x128xf32>
    %51 = math.tanh %50 : vector<1x128xf32>
    %cst_23 = arith.constant 5.000000e-01 : f32
    %52 = vector.broadcast %cst_23 : f32 to vector<1x128xf32>
    %53 = arith.mulf %52, %51 : vector<1x128xf32>
    %cst_24 = arith.constant 5.000000e-01 : f32
    %54 = vector.broadcast %cst_24 : f32 to vector<1x128xf32>
    %55 = arith.addf %53, %54 : vector<1x128xf32>
    %56 = vector.broadcast %40 : f32 to vector<1x128xf32>
    %57 = arith.mulf %56, %38 : vector<1x128xf32>
    %58 = vector.broadcast %43 : f32 to vector<1x128xf32>
    %59 = arith.addf %57, %58 : vector<1x128xf32>
    %60 = math.tanh %59 : vector<1x128xf32>
    %61 = vector.broadcast %41 : f32 to vector<1x128xf32>
    %62 = arith.mulf %61, %38 : vector<1x128xf32>
    %63 = vector.broadcast %44 : f32 to vector<1x128xf32>
    %64 = arith.addf %62, %63 : vector<1x128xf32>
    %cst_25 = arith.constant 5.000000e-01 : f32
    %65 = vector.broadcast %cst_25 : f32 to vector<1x128xf32>
    %66 = arith.mulf %65, %64 : vector<1x128xf32>
    %67 = math.tanh %66 : vector<1x128xf32>
    %cst_26 = arith.constant 5.000000e-01 : f32
    %68 = vector.broadcast %cst_26 : f32 to vector<1x128xf32>
    %69 = arith.mulf %68, %67 : vector<1x128xf32>
    %cst_27 = arith.constant 5.000000e-01 : f32
    %70 = vector.broadcast %cst_27 : f32 to vector<1x128xf32>
    %71 = arith.addf %69, %70 : vector<1x128xf32>
    %72 = arith.mulf %55, %60 : vector<1x128xf32>
    %73 = math.tanh %72 : vector<1x128xf32>
    %74 = arith.mulf %71, %73 : vector<1x128xf32>
    %c9 = arith.constant 9 : index
    %75 = memref.load %arg3[%c9] : memref<11xf32, #tpu.memory_space<smem>>
    %76 = vector.broadcast %75 : f32 to vector<1x128xf32>
    %77 = arith.mulf %76, %74 : vector<1x128xf32>
    %c10 = arith.constant 10 : index
    %78 = memref.load %arg3[%c10] : memref<11xf32, #tpu.memory_space<smem>>
    %79 = vector.broadcast %78 : f32 to vector<1x128xf32>
    %80 = arith.addf %77, %79 : vector<1x128xf32>
    %cst_28 = arith.constant 0.000000e+00 : f32
    %81 = vector.broadcast %cst_28 : f32 to vector<1x128xf32>
    %82 = arith.cmpf oge, %80, %81 : vector<1x128xf32>
    %cst_29 = arith.constant 0.00999999977 : f32
    %83 = vector.broadcast %cst_29 : f32 to vector<1x128xf32>
    %84 = arith.mulf %83, %80 : vector<1x128xf32>
    %85 = arith.select %82, %80, %84 : vector<1x128xi1>, vector<1x128xf32>
    %c0_30 = arith.constant 0 : index
    %c0_31 = arith.constant 0 : index
    %86 = vector.load %arg4[%c0_30, %c0_31] : memref<1x128xf32, #tpu.memory_space<vmem>>, vector<1x128xf32>
    tpu.vector_store %arg4[%c0_30, %c0_31], %85 {strides = array<i32>} : memref<1x128xf32, #tpu.memory_space<vmem>>, vector<1x128xf32>,
    return
  }
  func.func @transform_0(%arg0: i32) -> (i32, i32) {
    %c0_i32 = arith.constant 0 : i32
    %c0_i32_0 = arith.constant 0 : i32
    return %arg0, %c0_i32 : i32, i32
  }
  func.func @transform_1(%arg0: i32) -> (i32, i32) {
    %c0_i32 = arith.constant 0 : i32
    %c0_i32_0 = arith.constant 0 : i32
    %c0_i32_1 = arith.constant 0 : i32
    return %c0_i32, %c0_i32_0 : i32, i32
  }
  func.func @transform_2(%arg0: i32) -> i32 {
    %c0_i32 = arith.constant 0 : i32
    %c0_i32_0 = arith.constant 0 : i32
    return %c0_i32 : i32
  }
  func.func @transform_3(%arg0: i32) -> (i32, i32) {
    %c0_i32 = arith.constant 0 : i32
    %c0_i32_0 = arith.constant 0 : i32
    return %arg0, %c0_i32 : i32, i32
  }
}

</mosaic_0001>

<llo_original>
// kernel: tpu_custom_call.1
$region0: #{tpu_custom_call.1}
  #allocation0 [shape = 'u32[]', space=smem, size = 0x4, offset = 0x4, fixed_abs, tag = 'smem constant byte address 0x4 - core index']
  #allocation1 [shape = 'u32[144,128]{1,0:T(1,128)}', space=vmem, size = 0x12000, scoped, tag = 'internal scratch']
  #allocation2 [shape = 'f32[3,128]{1,0:T(4,128)}', space=vmem, size = 0x800, scoped, tag = 'scratch operand']
  %s0 = inlined_call_operand.hbm [shape: f32[8,16], index: 0, kind: input, shape index: {}]
  %s1 = inlined_call_operand.hbm [shape: f32[3,16], index: 1, kind: input, shape index: {}]
  %s2 = inlined_call_operand.vmem [shape: f32[11], index: 2, kind: input, shape index: {}]
  %s3 = inlined_call_operand.hbm [shape: f32[1,128], index: 3, kind: output, shape index: {}]
  %s4 = sld [smem:[#allocation0]]
  $region34: #{tpu_custom_call.1} parent=0
    _
  %s6 = ssub.s32 1, %s4
  %s7 = scalar_select 0, %s6, %s4
  $region1: #{tpu_custom_call.1} parent=0
    #allocation3 [shape = 'u8[65536]{0}', space=vmem, size = 0x10000, scoped, tag = 'input window, operand 0, single buffered']
    #allocation4 [shape = 's32[1]{0}', space=sflag, size = 0x4, scoped, tag = 'scoped memory for tpu_custom_call.1']
    #allocation5 [shape = 's32[1]{0}', space=sflag, size = 0x4, scoped, tag = 'scoped memory for tpu_custom_call.1']
    #allocation6 [shape = 's32[1]{0}', space=sflag, size = 0x4, scoped, tag = 'scoped memory for tpu_custom_call.1']
    #allocation7 [shape = 'u8[2048]{0}', space=vmem, size = 0x800, scoped, tag = 'input window, operand 1, single buffered']
    #allocation8 [shape = 's32[1]{0}', space=sflag, size = 0x4, scoped, tag = 'scoped memory for tpu_custom_call.1']
    #allocation9 [shape = 'u8[512]{0}', space=smem, size = 0x200, scoped, tag = 'input window, operand 2, single buffered']
    #allocation10 [shape = 'u8[512]{0}', space=vmem, size = 0x400, scoped, tag = 'output window, operand 0, single buffered']
    %8 = vsyncpa [#allocation4], 0
    %9 = vsyncpa [#allocation8], 0
    %10 = vsyncpa [#allocation6], 0
    %11 = vsyncpa [#allocation5], 0
    // Predicated region
    $region2: #{tpu_custom_call.1} parent=1 // pred_check
      _
    $region3: #{tpu_custom_call.1} parent=1 // pred_check_branch
      %13 = sbr.rel (0) target = $region5
    $region4: #{tpu_custom_call.1} parent=1 // pred_region
      %s15 = ssub.s32 2048, 128
      %16 = vsyncadd [#allocation4], %s15
      %s17 = sshll.u32 [#allocation3], 4
      %s18 = int_to_ptr.vmem [resolvable:$true] %s17
      %23 = dma.hbm_to_vmem [thread:$0]  %s0, 128, %s18, [#allocation4], 128, 128, 8
    $region5: #{tpu_custom_call.1} parent=1 // pred_fallthru
      _
    // Predicated region
    $region6: #{tpu_custom_call.1} parent=1 // pred_check
      _
    $region7: #{tpu_custom_call.1} parent=1 // pred_check_branch
      %25 = sbr.rel (0) target = $region9
    $region8: #{tpu_custom_call.1} parent=1 // pred_region
      %s27 = ssub.s32 64, 64
      %28 = vsyncadd [#allocation8], %s27
      %s30 = sshll.u32 [#allocation7], 4
      %s31 = int_to_ptr.vmem [resolvable:$true] %s30
      %33 = dma.hbm_to_vmem [thread:$0]  %s1, 64, %s31, [#allocation8]
    $region9: #{tpu_custom_call.1} parent=1 // pred_fallthru
      _
    // Predicated region
    $region10: #{tpu_custom_call.1} parent=1 // pred_check
      _
    $region11: #{tpu_custom_call.1} parent=1 // pred_check_branch
      %35 = sbr.rel (0) target = $region13
    $region12: #{tpu_custom_call.1} parent=1 // pred_region
      %s37 = ssub.s32 16, 16
      %38 = vsyncadd [#allocation6], %s37
      %s40 = sshll.u32 %s2, 4
      %s41 = int_to_ptr.vmem [resolvable:$true] %s40
      %43 = dma.vmem_to_smem %s41, 16, [#allocation9], [#allocation6]
    $region13: #{tpu_custom_call.1} parent=1 // pred_fallthru
      _
    // Predicated region
    $region14: #{tpu_custom_call.1} parent=1 // pred_check
      _
    $region15: #{tpu_custom_call.1} parent=1 // pred_check_branch
      %45 = sbr.rel (0) target = $region17
    $region16: #{tpu_custom_call.1} parent=1 // pred_region
      %46 = dma.done [#allocation4], 2048
    $region17: #{tpu_custom_call.1} parent=1 // pred_fallthru
      _
    // Predicated region
    $region18: #{tpu_custom_call.1} parent=1 // pred_check
      _
    $region19: #{tpu_custom_call.1} parent=1 // pred_check_branch
      %48 = sbr.rel (0) target = $region21
    $region20: #{tpu_custom_call.1} parent=1 // pred_region
      %49 = dma.done [#allocation8], 64
    $region21: #{tpu_custom_call.1} parent=1 // pred_fallthru
      _
    // Predicated region
    $region22: #{tpu_custom_call.1} parent=1 // pred_check
      _
    $region23: #{tpu_custom_call.1} parent=1 // pred_check_branch
      %51 = sbr.rel (0) target = $region25
    $region24: #{tpu_custom_call.1} parent=1 // pred_region
      %52 = dma.done [#allocation6], 16
    $region25: #{tpu_custom_call.1} parent=1 // pred_fallthru
      _
    %53 = sfence
    %v54 = vld [vmem:[#allocation7] sm:$0x7]
    %v55 = vld [vmem:[#allocation3] sm:$0xff]
    %v56 = vld [vmem:[#allocation3 + $0x8] sm:$0xff]
    %v57 = vld [vmem:[#allocation3 + $0x10] sm:$0xff]
    %v58 = vld [vmem:[#allocation3 + $0x18] sm:$0xff]
    %v59 = vld [vmem:[#allocation3 + $0x20] sm:$0xff]
    %v60 = vld [vmem:[#allocation3 + $0x28] sm:$0xff]
    %v61 = vld [vmem:[#allocation3 + $0x30] sm:$0xff]
    %v62 = vld [vmem:[#allocation3 + $0x38] sm:$0xff]
    %v63 = vld [vmem:[#allocation3 + $0x40] sm:$0xff]
    %v64 = vld [vmem:[#allocation3 + $0x48] sm:$0xff]
    %v65 = vld [vmem:[#allocation3 + $0x50] sm:$0xff]
    %v66 = vld [vmem:[#allocation3 + $0x58] sm:$0xff]
    %v67 = vld [vmem:[#allocation3 + $0x60] sm:$0xff]
    %v68 = vld [vmem:[#allocation3 + $0x68] sm:$0xff]
    %v69 = vld [vmem:[#allocation3 + $0x70] sm:$0xff]
    %v70 = vld [vmem:[#allocation3 + $0x78] sm:$0xff]
    %vm71 = vcmask 130048
    %v73 = vsel %vm71, %v54, 0
    %v76 = vsel %vm71, %v55, 0
    %v79 = vsel %vm71, %v56, 0
    %v82 = vsel %vm71, %v57, 0
    %v85 = vsel %vm71, %v58, 0
    %v88 = vsel %vm71, %v59, 0
    %v91 = vsel %vm71, %v60, 0
    %v94 = vsel %vm71, %v61, 0
    %v97 = vsel %vm71, %v62, 0
    %v100 = vsel %vm71, %v63, 0
    %v103 = vsel %vm71, %v64, 0
    %v106 = vsel %vm71, %v65, 0
    %v109 = vsel %vm71, %v66, 0
    %v112 = vsel %vm71, %v67, 0
    %v115 = vsel %vm71, %v68, 0
    %v118 = vsel %vm71, %v69, 0
    %v121 = vsel %vm71, %v70, 0
    %123 = vmatprep.subr.mxu0 0.0
    %124 = vmatpush1.xpose.msra.mxu0 %v76
    %125 = vmatprep.subr.mxu0 0.0
    %126 = vmatpush1.xpose.msra.mxu0 %v79
    %127 = vmatprep.subr.mxu0 0.0
    %128 = vmatpush1.xpose.msra.mxu0 %v82
    %129 = vmatprep.subr.mxu0 0.0
    %130 = vmatpush1.xpose.msra.mxu0 %v85
    %131 = vmatprep.subr.mxu0 0.0
    %132 = vmatpush1.xpose.msra.mxu0 %v88
    %133 = vmatprep.subr.mxu0 0.0
    %134 = vmatpush1.xpose.msra.mxu0 %v91
    %135 = vmatprep.subr.mxu0 0.0
    %136 = vmatpush1.xpose.msra.mxu0 %v94
    %137 = vmatprep.subr.mxu0 0.0
    %138 = vmatpush1.xpose.msra.mxu0 %v97
    %139 = vmatprep.subr.mxu0 0.0
    %140 = vmatpush1.xpose.msra.mxu0 %v100
    %141 = vmatprep.subr.mxu0 0.0
    %142 = vmatpush1.xpose.msra.mxu0 %v103
    %143 = vmatprep.subr.mxu0 0.0
    %144 = vmatpush1.xpose.msra.mxu0 %v106
    %145 = vmatprep.subr.mxu0 0.0
    %146 = vmatpush1.xpose.msra.mxu0 %v109
    %147 = vmatprep.subr.mxu0 0.0
    %148 = vmatpush1.xpose.msra.mxu0 %v112
    %149 = vmatprep.subr.mxu0 0.0
    %150 = vmatpush1.xpose.msra.mxu0 %v115
    %151 = vmatprep.subr.mxu0 0.0
    %152 = vmatpush1.xpose.msra.mxu0 %v118
    %153 = vmatprep.subr.mxu0 0.0
    %154 = vmatpush1.xpose.msra.mxu0 %v121
    %155 = vmatprep.subr.mxu0 0.0
    %156 = vmatpush1.xpose.msra.mxu0 0.0
    %157 = vmatprep.subr.mxu0 0.0
    %158 = vmatpush1.xpose.msra.mxu0 0.0
    %159 = vmatprep.subr.mxu0 0.0
    %160 = vmatpush1.xpose.msra.mxu0 0.0
    %161 = vmatprep.subr.mxu0 0.0
    %162 = vmatpush1.xpose.msra.mxu0 0.0
    %163 = vmatprep.subr.mxu0 0.0
    %164 = vmatpush1.xpose.msra.mxu0 0.0
    %165 = vmatprep.subr.mxu0 0.0
    %166 = vmatpush1.xpose.msra.mxu0 0.0
    %167 = vmatprep.subr.mxu0 0.0
    %168 = vmatpush1.xpose.msra.mxu0 0.0
    %169 = vmatprep.subr.mxu0 0.0
    %170 = vmatpush1.xpose.msra.mxu0 0.0
    %171 = vmatprep.subr.mxu0 0.0
    %172 = vmatpush1.xpose.msra.mxu0 0.0
    %173 = vmatprep.subr.mxu0 0.0
    %174 = vmatpush1.xpose.msra.mxu0 0.0
    %175 = vmatprep.subr.mxu0 0.0
    %176 = vmatpush1.xpose.msra.mxu0 0.0
    %177 = vmatprep.subr.mxu0 0.0
    %178 = vmatpush1.xpose.msra.mxu0 0.0
    %179 = vmatprep.subr.mxu0 0.0
    %180 = vmatpush1.xpose.msra.mxu0 0.0
    %181 = vmatprep.subr.mxu0 0.0
    %182 = vmatpush1.xpose.msra.mxu0 0.0
    %183 = vmatprep.subr.mxu0 0.0
    %184 = vmatpush1.xpose.msra.mxu0 0.0
    %185 = vmatprep.subr.mxu0 0.0
    %186 = vmatpush1.xpose.msra.mxu0 0.0
    %187 = vmatprep.mubr.f32.mxu0 0.0
    %188 = vmatmul.mubr.f32.gmra.mrb[0].mxu0 %v73
    %v189 = vpop.f32.mrb[0].mxu0
    %v190 = vadd.f32 0.0, %v189
    %v191 = vpop.f32.mrb[0].mxu0
    %192 = vdwg.mxu0
    %193 = vst [vmem:[#allocation2] sm:$0x1] %v190
    %194 = vst [vmem:[#allocation2] sm:$0x2] %v190
    %195 = vst [vmem:[#allocation2] sm:$0x4] %v190
    %v196 = vld [vmem:[#allocation2] sm:$0x1]
    %s197 = sld [smem:[#allocation9]]
    %v198 = vstv %s197
    %v199 = vadd.f32 %v196, %v198
    %v200 = vmul.f32 %v199, 0.5
    %v201 = vtanh.pop %v200
    %v202 = vmul.f32 %v201, 0.5
    %v203 = vadd.f32 %v202, 0.5
    %v204 = vld [vmem:[#allocation2 + $0x1] sm:$0x1]
    %s205 = sld [smem:[#allocation9 + $0x1]]
    %v206 = vstv %s205
    %v207 = vadd.f32 %v204, %v206
    %v208 = vtanh.pop %v207
    %v209 = vld [vmem:[#allocation2 + $0x2] sm:$0x1]
    %s210 = sld [smem:[#allocation9 + $0x2]]
    %v211 = vstv %s210
    %v212 = vadd.f32 %v209, %v211
    %v213 = vmul.f32 %v212, 0.5
    %v214 = vtanh.pop %v213
    %v215 = vmul.f32 %v214, 0.5
    %v216 = vadd.f32 %v215, 0.5
    %v217 = vmul.f32 %v203, %v208
    %v218 = vtanh.pop %v217
    %v219 = vmul.f32 %v216, %v218
    %s220 = sld [smem:[#allocation9 + $0x3]]
    %s221 = sld [smem:[#allocation9 + $0x4]]
    %s222 = sld [smem:[#allocation9 + $0x5]]
    %s223 = sld [smem:[#allocation9 + $0x6]]
    %s224 = sld [smem:[#allocation9 + $0x7]]
    %s225 = sld [smem:[#allocation9 + $0x8]]
    %v226 = vstv %s220
    %v227 = vmul.f32 %v226, %v219
    %v228 = vstv %s223
    %v229 = vadd.f32 %v227, %v228
    %v230 = vmul.f32 %v229, 0.5
    %v231 = vtanh.pop %v230
    %v232 = vmul.f32 %v231, 0.5
    %v233 = vadd.f32 %v232, 0.5
    %v234 = vstv %s221
    %v235 = vmul.f32 %v234, %v219
    %v236 = vstv %s224
    %v237 = vadd.f32 %v235, %v236
    %v238 = vtanh.pop %v237
    %v239 = vstv %s222
    %v240 = vmul.f32 %v239, %v219
    %v241 = vstv %s225
    %v242 = vadd.f32 %v240, %v241
    %v243 = vmul.f32 %v242, 0.5
    %v244 = vtanh.pop %v243
    %v245 = vmul.f32 %v244, 0.5
    %v246 = vadd.f32 %v245, 0.5
    %v247 = vmul.f32 %v233, %v238
    %v248 = vtanh.pop %v247
    %v249 = vmul.f32 %v246, %v248
    %s250 = sld [smem:[#allocation9 + $0x9]]
    %v251 = vstv %s250
    %v252 = vmul.f32 %v251, %v249
    %s253 = sld [smem:[#allocation9 + $0xa]]
    %v254 = vstv %s253
    %v255 = vadd.f32 %v252, %v254
    %vm256 = vcmp.ge.f32.partialorder %v255, 0.0
    %v257 = vmul.f32 %v255, 0.01
    %v258 = vsel %vm256, %v255, %v257
    %259 = vst [vmem:[#allocation10] sm:$0x1] %v258
    // Predicated region
    $region26: #{tpu_custom_call.1} parent=1 // pred_check
      _
    $region27: #{tpu_custom_call.1} parent=1 // pred_check_branch
      %261 = sbr.rel (0) target = $region29
    $region28: #{tpu_custom_call.1} parent=1 // pred_region
      %s263 = ssub.s32 16, 16
      %264 = vsyncadd [#allocation5], %s263
      %s266 = sshll.u32 [#allocation10], 4
      %s267 = int_to_ptr.vmem [resolvable:$true] %s266
      %269 = dma.vmem_to_hbm [thread:$0]  %s267, 16, %s3, [#allocation5]
    $region29: #{tpu_custom_call.1} parent=1 // pred_fallthru
      _
    // Predicated region
    $region30: #{tpu_custom_call.1} parent=1 // pred_check
      _
    $region31: #{tpu_custom_call.1} parent=1 // pred_check_branch
      %271 = sbr.rel (0) target = $region33
    $region32: #{tpu_custom_call.1} parent=1 // pred_region
      %272 = dma.done [#allocation5], 16
    $region33: #{tpu_custom_call.1} parent=1 // pred_fallthru
      _
    %273 = vsyncpa [#allocation4], 1
    %274 = vsyncpa [#allocation8], 1
    %275 = vsyncpa [#allocation5], 1
    %276 = vsyncpa [#allocation6], 1

</llo_original>
